<compile_context>
chip_gen: v5e
topology: v5e:2x2
jax: 0.10.0
libtpu: 0.0.40
codegen_flags: <defaults>
</compile_context>

<pallas_src>
import functools

import jax
import jax.numpy as jnp
from jax.experimental import pallas as pl
from jax.experimental.pallas import tpu as pltpu

BN_EPS = 1e-5


def _vmem_limit_bytes():
    # Chip-aware scoped-VMEM budget: generous on v5e/v6e (128 MiB physical), capped
    # well under v7x's 64 MiB physical VMEM.
    try:
        cap = pltpu.get_tpu_info().vmem_capacity_bytes
    except Exception:  # interpret mode / unknown chip
        cap = 64 * 1024 * 1024
    return int(min(96 * 1024 * 1024, cap * 3 // 4))


def _conv_tile(x_ref, w_ref, length):
    """k=3 / pad=1 conv of one batch row as a single im2col matmul.

    x_ref : (Cin, L)       native channels-on-sublanes, positions-on-lanes layout
    w_ref : (Cout, 3*Cin)  taps flattened as k*Cin + ci
    returns (Cout, L) f32 (MXU accumulation), bias-free.
    """
    x = x_ref[...]
    zero = jnp.zeros((x.shape[0], 1), x.dtype)
    xp = jnp.concatenate([zero, x, zero], axis=1)                  # (Cin, L+2)
    win = jnp.concatenate(                                         # (3*Cin, L) im2col
        [xp[:, 0:length], xp[:, 1:length + 1], xp[:, 2:length + 2]], axis=0)
    return jnp.dot(w_ref[...], win, preferred_element_type=jnp.float32)


def _conv_stats_kernel(x_ref, w_ref, stats_ref, *, length):
    """Phase 1: per-batch BN partial statistics of the (bias-free) conv output.

    stats[:, 0] = sum over L; stats[:, 1] = sum of squared deviations from the
    per-batch mean (combined across batches with Chan's formula in the wrapper).
    """
    y = _conv_tile(x_ref, w_ref, length)                           # (Cout, L) f32
    s = jnp.sum(y, axis=1, keepdims=True)                          # (Cout, 1)
    mu = s * (1.0 / length)
    d = y - mu
    m2 = jnp.sum(d * d, axis=1, keepdims=True)                     # (Cout, 1)
    stats_ref[...] = jnp.concatenate([s, m2], axis=1)              # (Cout, 2)


def _conv_bn_relu_kernel(x_ref, w_ref, scale_ref, shift_ref, o_ref, *, length):
    """Phase 2: recompute the conv, apply folded BN (y*scale + shift), ReLU."""
    y = _conv_tile(x_ref, w_ref, length)                           # (Cout, L) f32
    o_ref[...] = jnp.maximum(
        y * scale_ref[...] + shift_ref[...], 0.0).astype(o_ref.dtype)


@jax.jit
def up_conv_forward(x_ncl, w, b, gamma, beta):
    """x_ncl: (N, Cin, L); w: (Cout, Cin, 3); b/gamma/beta: (Cout,).
    Returns (N, Cout, L), matching PyTorch up_conv(ch_in, ch_out)(x) in train mode.
    (Upsample(scale_factor=1) is the identity.)"""
    N, Cin, L = x_ncl.shape
    Cout = w.shape[0]
    dt = x_ncl.dtype

    # Taps flattened for the im2col matmul: W2[co, k*Cin + ci] = w[co, ci, k].
    w2 = jnp.transpose(w, (0, 2, 1)).reshape(Cout, 3 * Cin).astype(dt)

    cparams = pltpu.CompilerParams(
        dimension_semantics=("parallel",),
        vmem_limit_bytes=_vmem_limit_bytes(),
    )

    # ---- phase 1: bias-free conv + per-batch partial BN statistics ----
    stats = pl.pallas_call(
        functools.partial(_conv_stats_kernel, length=L),
        out_shape=jax.ShapeDtypeStruct((N, Cout, 2), jnp.float32),
        grid_spec=pltpu.PrefetchScalarGridSpec(
            num_scalar_prefetch=0,
            grid=(N,),
            in_specs=[
                pl.BlockSpec((None, Cin, L), lambda n: (n, 0, 0)),
                pl.BlockSpec((Cout, 3 * Cin), lambda n: (0, 0)),   # resident weights
            ],
            out_specs=pl.BlockSpec((None, Cout, 2), lambda n: (n, 0, 0)),
        ),
        compiler_params=cparams,
    )(x_ncl, w2)

    # ---- global BN statistics (tiny per-channel math, plain XLA) ----
    # Chan's parallel-variance combine of per-batch (sum, M2); numerically much better
    # conditioned than E[y^2] - E[y]^2.  The conv bias shifts the batch mean and is then
    # subtracted right back by BN, so it cancels exactly and never enters the kernels.
    cnt = jnp.float32(N * L)
    s_b = stats[..., 0]                                   # (N, Cout) per-batch sums
    m2_b = stats[..., 1]                                  # (N, Cout) per-batch M2
    mean = jnp.sum(s_b, axis=0) / cnt                     # (Cout,)  bias-free conv mean
    mu_b = s_b / jnp.float32(L)
    m2 = jnp.sum(m2_b, axis=0) + jnp.float32(L) * jnp.sum((mu_b - mean) ** 2, axis=0)
    var = m2 / cnt
    inv = jax.lax.rsqrt(var + BN_EPS)
    scale = (gamma.astype(jnp.float32) * inv)[:, None]                  # (Cout, 1)
    shift = beta.astype(jnp.float32)[:, None] - mean[:, None] * scale   # (Cout, 1)
    _ = b  # conv bias cancels exactly under batch-norm normalization (see note above)

    # ---- phase 2: recompute conv, apply folded BN + ReLU, emit (N, Cout, L) ----
    out = pl.pallas_call(
        functools.partial(_conv_bn_relu_kernel, length=L),
        out_shape=jax.ShapeDtypeStruct((N, Cout, L), dt),
        grid_spec=pltpu.PrefetchScalarGridSpec(
            num_scalar_prefetch=0,
            grid=(N,),
            in_specs=[
                pl.BlockSpec((None, Cin, L), lambda n: (n, 0, 0)),
                pl.BlockSpec((Cout, 3 * Cin), lambda n: (0, 0)),   # resident weights
                pl.BlockSpec((Cout, 1), lambda n: (0, 0)),
                pl.BlockSpec((Cout, 1), lambda n: (0, 0)),
            ],
            out_specs=pl.BlockSpec((None, Cout, L), lambda n: (n, 0, 0)),
        ),
        compiler_params=cparams,
    )(x_ncl, w2, scale, shift)

    return out


def _reference(x_ncl, w, b, gamma, beta):
    y = jax.lax.conv_general_dilated(
        x_ncl, w, window_strides=(1,), padding=((1, 1),),
        dimension_numbers=('NCH', 'OIH', 'NCH'))
    y = y + b[None, :, None]
    mean = jnp.mean(y, axis=(0, 2), keepdims=True)
    var = jnp.mean((y - mean) ** 2, axis=(0, 2), keepdims=True)
    y = (y - mean) * jax.lax.rsqrt(var + BN_EPS)
    y = y * gamma[None, :, None] + beta[None, :, None]
    return jnp.maximum(y, 0.0)


if __name__ == "__main__":
    key = jax.random.PRNGKey(0)
    N, Cin, Cout, L = 2, 4, 8, 16

    kx, kw, kb = jax.random.split(key, 3)
    x = jax.random.normal(kx, (N, Cin, L), dtype=jnp.float32)

    # Deterministic parameter init (PyTorch-style uniform bound for Conv1d).
    fan_in = Cin * 3
    bound = 1.0 / float(fan_in) ** 0.5
    w = jax.random.uniform(kw, (Cout, Cin, 3), jnp.float32, -bound, bound)
    b = jax.random.uniform(kb, (Cout,), jnp.float32, -bound, bound)
    gamma = jnp.ones((Cout,), jnp.float32)   # BatchNorm1d weight init
    beta = jnp.zeros((Cout,), jnp.float32)   # BatchNorm1d bias init

    out = jax.block_until_ready(up_conv_forward(x, w, b, gamma, beta))
    ref = jax.block_until_ready(_reference(x, w, b, gamma, beta))
    assert out.shape == (N, Cout, L)
    assert jnp.allclose(out, ref, atol=1e-3, rtol=1e-3), float(jnp.max(jnp.abs(out - ref)))
    print("KERNEL_OK")
</pallas_src>

<mosaic_0001>
module attributes {stable_mosaic.version = 11 : i64} {
  func.func @_conv_stats_kernel(%arg0: i32, %arg1: memref<1x4x16xf32, #tpu.memory_space<vmem>>, %arg2: memref<8x12xf32, #tpu.memory_space<vmem>>, %arg3: memref<1x8x2xf32, #tpu.memory_space<vmem>>) attributes {dimension_semantics = [#tpu.dimension_semantics<parallel>], iteration_bounds = array<i64: 2>, scalar_prefetch = 0 : i64, scratch_operands = 0 : i64, tpu.core_type = #tpu.core_type<tc>, window_params = [{transform_indices = @transform_0, window_bounds = array<i64: 1, 4, 16>}, {pipeline_mode = #tpu.pipeline_mode<synchronous>, transform_indices = @transform_1, window_bounds = array<i64: 8, 12>}, {transform_indices = @transform_2, window_bounds = array<i64: 1, 8, 2>}]} {
    %c0 = arith.constant 0 : index
    %c0_0 = arith.constant 0 : index
    %c0_1 = arith.constant 0 : index
    %0 = vector.load %arg1[%c0, %c0_0, %c0_1] : memref<1x4x16xf32, #tpu.memory_space<vmem>>, vector<1x4x16xf32>
    %1 = vector.shape_cast %0 : vector<1x4x16xf32> to vector<4x16xf32>
    %cst = arith.constant 0.000000e+00 : f32
    %2 = vector.broadcast %cst : f32 to vector<4x1xf32>
    %3 = tpu.concatenate %2, %1, %2 in 1 : vector<4x1xf32>, vector<4x16xf32>, vector<4x1xf32> -> vector<4x18xf32>
    %4 = vector.extract_strided_slice %3 {offsets = [0, 0], sizes = [4, 16], strides = [1, 1]} : vector<4x18xf32> to vector<4x16xf32>
    %5 = vector.extract_strided_slice %3 {offsets = [0, 1], sizes = [4, 16], strides = [1, 1]} : vector<4x18xf32> to vector<4x16xf32>
    %6 = vector.extract_strided_slice %3 {offsets = [0, 2], sizes = [4, 16], strides = [1, 1]} : vector<4x18xf32> to vector<4x16xf32>
    %7 = tpu.concatenate %4, %5, %6 in 0 : vector<4x16xf32>, vector<4x16xf32>, vector<4x16xf32> -> vector<12x16xf32>
    %c0_2 = arith.constant 0 : index
    %c0_3 = arith.constant 0 : index
    %8 = vector.load %arg2[%c0_2, %c0_3] : memref<8x12xf32, #tpu.memory_space<vmem>>, vector<8x12xf32>
    %cst_4 = arith.constant dense<0.000000e+00> : vector<8x16xf32>
    %9 = tpu.matmul %8, %7, %cst_4 {dimension_numbers = #tpu.dot_dimension_numbers<[1], [0], [0], [1], [0, 0, 1, 1], [], []>} : vector<8x12xf32>, vector<12x16xf32>, vector<8x16xf32> -> vector<8x16xf32>
    %cst_5 = arith.constant dense<0.000000e+00> : vector<8xf32>
    %10 = vector.multi_reduction <add>, %9, %cst_5 [1] : vector<8x16xf32> to vector<8xf32>
    %11 = vector.shape_cast %10 : vector<8xf32> to vector<8x1xf32>
    %cst_6 = arith.constant 6.250000e-02 : f32
    %12 = vector.broadcast %cst_6 : f32 to vector<8x1xf32>
    %13 = arith.mulf %11, %12 : vector<8x1xf32>
    %14 = vector.broadcast %13 : vector<8x1xf32> to vector<8x16xf32>
    %15 = arith.subf %9, %14 : vector<8x16xf32>
    %16 = arith.mulf %15, %15 : vector<8x16xf32>
    %cst_7 = arith.constant dense<0.000000e+00> : vector<8xf32>
    %17 = vector.multi_reduction <add>, %16, %cst_7 [1] : vector<8x16xf32> to vector<8xf32>
    %18 = vector.shape_cast %17 : vector<8xf32> to vector<8x1xf32>
    %19 = tpu.concatenate %11, %18 in 1 : vector<8x1xf32>, vector<8x1xf32> -> vector<8x2xf32>
    %c0_8 = arith.constant 0 : index
    %c0_9 = arith.constant 0 : index
    %c0_10 = arith.constant 0 : index
    %20 = vector.load %arg3[%c0_8, %c0_9, %c0_10] : memref<1x8x2xf32, #tpu.memory_space<vmem>>, vector<1x8x2xf32>
    %21 = vector.shape_cast %20 : vector<1x8x2xf32> to vector<8x2xf32>
    %22 = vector.shape_cast %19 : vector<8x2xf32> to vector<1x8x2xf32>
    tpu.vector_store %arg3[%c0_8, %c0_9, %c0_10], %22 {strides = array<i32>} : memref<1x8x2xf32, #tpu.memory_space<vmem>>, vector<1x8x2xf32>,
    return
  }
  func.func @transform_0(%arg0: i32) -> (i32, i32, i32) {
    %c0_i32 = arith.constant 0 : i32
    %c0_i32_0 = arith.constant 0 : i32
    %c0_i32_1 = arith.constant 0 : i32
    return %arg0, %c0_i32, %c0_i32_0 : i32, i32, i32
  }
  func.func @transform_1(%arg0: i32) -> (i32, i32) {
    %c0_i32 = arith.constant 0 : i32
    %c0_i32_0 = arith.constant 0 : i32
    %c0_i32_1 = arith.constant 0 : i32
    return %c0_i32, %c0_i32_0 : i32, i32
  }
  func.func @transform_2(%arg0: i32) -> (i32, i32, i32) {
    %c0_i32 = arith.constant 0 : i32
    %c0_i32_0 = arith.constant 0 : i32
    %c0_i32_1 = arith.constant 0 : i32
    return %arg0, %c0_i32, %c0_i32_0 : i32, i32, i32
  }
}

module attributes {stable_mosaic.version = 11 : i64} {
  func.func @_conv_bn_relu_kernel(%arg0: i32, %arg1: memref<1x4x16xf32, #tpu.memory_space<vmem>>, %arg2: memref<8x12xf32, #tpu.memory_space<vmem>>, %arg3: memref<8x1xf32, #tpu.memory_space<vmem>>, %arg4: memref<8x1xf32, #tpu.memory_space<vmem>>, %arg5: memref<1x8x16xf32, #tpu.memory_space<vmem>>) attributes {dimension_semantics = [#tpu.dimension_semantics<parallel>], iteration_bounds = array<i64: 2>, scalar_prefetch = 0 : i64, scratch_operands = 0 : i64, tpu.core_type = #tpu.core_type<tc>, window_params = [{transform_indices = @transform_0, window_bounds = array<i64: 1, 4, 16>}, {pipeline_mode = #tpu.pipeline_mode<synchronous>, transform_indices = @transform_1, window_bounds = array<i64: 8, 12>}, {pipeline_mode = #tpu.pipeline_mode<synchronous>, transform_indices = @transform_2, window_bounds = array<i64: 8, 1>}, {pipeline_mode = #tpu.pipeline_mode<synchronous>, transform_indices = @transform_3, window_bounds = array<i64: 8, 1>}, {transform_indices = @transform_4, window_bounds = array<i64: 1, 8, 16>}]} {
    %c0 = arith.constant 0 : index
    %c0_0 = arith.constant 0 : index
    %c0_1 = arith.constant 0 : index
    %0 = vector.load %arg1[%c0, %c0_0, %c0_1] : memref<1x4x16xf32, #tpu.memory_space<vmem>>, vector<1x4x16xf32>
    %1 = vector.shape_cast %0 : vector<1x4x16xf32> to vector<4x16xf32>
    %cst = arith.constant 0.000000e+00 : f32
    %2 = vector.broadcast %cst : f32 to vector<4x1xf32>
    %3 = tpu.concatenate %2, %1, %2 in 1 : vector<4x1xf32>, vector<4x16xf32>, vector<4x1xf32> -> vector<4x18xf32>
    %4 = vector.extract_strided_slice %3 {offsets = [0, 0], sizes = [4, 16], strides = [1, 1]} : vector<4x18xf32> to vector<4x16xf32>
    %5 = vector.extract_strided_slice %3 {offsets = [0, 1], sizes = [4, 16], strides = [1, 1]} : vector<4x18xf32> to vector<4x16xf32>
    %6 = vector.extract_strided_slice %3 {offsets = [0, 2], sizes = [4, 16], strides = [1, 1]} : vector<4x18xf32> to vector<4x16xf32>
    %7 = tpu.concatenate %4, %5, %6 in 0 : vector<4x16xf32>, vector<4x16xf32>, vector<4x16xf32> -> vector<12x16xf32>
    %c0_2 = arith.constant 0 : index
    %c0_3 = arith.constant 0 : index
    %8 = vector.load %arg2[%c0_2, %c0_3] : memref<8x12xf32, #tpu.memory_space<vmem>>, vector<8x12xf32>
    %cst_4 = arith.constant dense<0.000000e+00> : vector<8x16xf32>
    %9 = tpu.matmul %8, %7, %cst_4 {dimension_numbers = #tpu.dot_dimension_numbers<[1], [0], [0], [1], [0, 0, 1, 1], [], []>} : vector<8x12xf32>, vector<12x16xf32>, vector<8x16xf32> -> vector<8x16xf32>
    %c0_5 = arith.constant 0 : index
    %c0_6 = arith.constant 0 : index
    %10 = vector.load %arg3[%c0_5, %c0_6] : memref<8x1xf32, #tpu.memory_space<vmem>>, vector<8x1xf32>
    %11 = vector.broadcast %10 : vector<8x1xf32> to vector<8x16xf32>
    %12 = arith.mulf %9, %11 : vector<8x16xf32>
    %c0_7 = arith.constant 0 : index
    %c0_8 = arith.constant 0 : index
    %13 = vector.load %arg4[%c0_7, %c0_8] : memref<8x1xf32, #tpu.memory_space<vmem>>, vector<8x1xf32>
    %14 = vector.broadcast %13 : vector<8x1xf32> to vector<8x16xf32>
    %15 = arith.addf %12, %14 : vector<8x16xf32>
    %cst_9 = arith.constant 0.000000e+00 : f32
    %16 = vector.broadcast %cst_9 : f32 to vector<8x16xf32>
    %17 = arith.maximumf %15, %16 : vector<8x16xf32>
    %c0_10 = arith.constant 0 : index
    %c0_11 = arith.constant 0 : index
    %c0_12 = arith.constant 0 : index
    %18 = vector.load %arg5[%c0_10, %c0_11, %c0_12] : memref<1x8x16xf32, #tpu.memory_space<vmem>>, vector<1x8x16xf32>
    %19 = vector.shape_cast %18 : vector<1x8x16xf32> to vector<8x16xf32>
    %20 = vector.shape_cast %17 : vector<8x16xf32> to vector<1x8x16xf32>
    tpu.vector_store %arg5[%c0_10, %c0_11, %c0_12], %20 {strides = array<i32>} : memref<1x8x16xf32, #tpu.memory_space<vmem>>, vector<1x8x16xf32>,
    return
  }
  func.func @transform_0(%arg0: i32) -> (i32, i32, i32) {
    %c0_i32 = arith.constant 0 : i32
    %c0_i32_0 = arith.constant 0 : i32
    %c0_i32_1 = arith.constant 0 : i32
    return %arg0, %c0_i32, %c0_i32_0 : i32, i32, i32
  }
  func.func @transform_1(%arg0: i32) -> (i32, i32) {
    %c0_i32 = arith.constant 0 : i32
    %c0_i32_0 = arith.constant 0 : i32
    %c0_i32_1 = arith.constant 0 : i32
    return %c0_i32, %c0_i32_0 : i32, i32
  }
  func.func @transform_2(%arg0: i32) -> (i32, i32) {
    %c0_i32 = arith.constant 0 : i32
    %c0_i32_0 = arith.constant 0 : i32
    %c0_i32_1 = arith.constant 0 : i32
    return %c0_i32, %c0_i32_0 : i32, i32
  }
  func.func @transform_3(%arg0: i32) -> (i32, i32) {
    %c0_i32 = arith.constant 0 : i32
    %c0_i32_0 = arith.constant 0 : i32
    %c0_i32_1 = arith.constant 0 : i32
    return %c0_i32, %c0_i32_0 : i32, i32
  }
  func.func @transform_4(%arg0: i32) -> (i32, i32, i32) {
    %c0_i32 = arith.constant 0 : i32
    %c0_i32_0 = arith.constant 0 : i32
    %c0_i32_1 = arith.constant 0 : i32
    return %arg0, %c0_i32, %c0_i32_0 : i32, i32, i32
  }
}

</mosaic_0001>

<llo_original>
// kernel: up_conv_forward.2
$region0: #{up_conv_forward.2}
  #allocation0 [shape = 'u32[]', space=smem, size = 0x4, offset = 0x4, fixed_abs, tag = 'smem constant byte address 0x4 - core index']
  #allocation1 [shape = 'u32[72,128]{1,0:T(1,128)}', space=vmem, size = 0x9000, scoped, tag = 'internal scratch']
  %s0 = inlined_call_operand.vmem [shape: f32[2,4,16], index: 0, kind: input, shape index: {}]
  %s1 = inlined_call_operand.vmem [shape: f32[8,12], index: 1, kind: input, shape index: {}]
  %s2 = inlined_call_operand.vmem [shape: f32[2,8,2], index: 2, kind: output, shape index: {}]
  %s3 = sld [smem:[#allocation0]]
  $region41: #{up_conv_forward.2} parent=0
    _
  %s5 = ssub.s32 1, %s3
  %s6 = scalar_select 0, %s5, %s3
  loop: start=0, step=1, limit=4
  $region2: #{up_conv_forward.2} parent=0 // loop_pre_header
    _
  $region3: #{up_conv_forward.2} parent=0 // loop_header
    %s8 = sphi 0, %s12
    %p9 = scmp.ge.s32.totalorder %s8, 4
    %s18 = sphi 0, %s20
    %s21 = sphi 0, %s18
    %s22 = sphi 0, %s21
    %s38 = sphi 0, %s22
    %s42 = sphi 0, %s42
    %s44 = sphi 0, %s42
    %s45 = sphi 0, %s44
    %s59 = sphi 0, %s45
    %s65 = sphi 0, %s67
    %s68 = sphi 0, %s65
    %s69 = sphi 0, %s68
    %s85 = sphi 0, %s69
  $region4: #{up_conv_forward.2} parent=0 // loop_header_branch
    %11 = sbr.rel (%p9) target = $region8
  $region5: #{up_conv_forward.2} parent=0 // loop_body
    %s13 = ssub.s32 %s8, 1
    %s14 = ssub.s32 %s8, 2
    %s15 = sadd.s32 %s8, 1
    %s16 = ssub.s32 %s8, %s15
    %p17 = scmp.eq.s32.totalorder %s16, 0
    %s19 = sadd.s32 %s18, 1
    %s20 = scalar_select %p17, %s18, %s19
    %p23 = pneg %p17
    %p24 = scmp.eq.s32.totalorder %s8, 1
    %p25 = por %p23, %p24
    %p26 = scmp.ne.s32.totalorder %s18, %s21
    %p27 = scmp.eq.s32.totalorder %s8, 0
    %p28 = por %p26, %p27
    %p29 = scmp.ne.s32.totalorder %s18, %s21
    %p30 = scmp.eq.s32.totalorder %s13, 1
    %p31 = por %p29, %p30
    %p32 = scmp.ne.s32.totalorder %s21, %s22
    %p33 = scmp.eq.s32.totalorder %s13, 0
    %p34 = por %p32, %p33
    %p35 = scmp.ne.s32.totalorder %s21, %s22
    %p36 = scmp.eq.s32.totalorder %s14, 1
    %p37 = por %p35, %p36
    %p39 = scmp.ne.s32.totalorder %s22, %s38
    %p40 = scmp.eq.s32.totalorder %s14, 0
    %p41 = por %p39, %p40
    %s43 = sadd.s32 %s42, 1
    %p46 = scmp.eq.s32.totalorder %s8, 1
    %p47 = scmp.ne.s32.totalorder %s42, %s44
    %p48 = scmp.eq.s32.totalorder %s8, 0
    %p49 = por %p47, %p48
    %p50 = scmp.ne.s32.totalorder %s42, %s44
    %p51 = scmp.eq.s32.totalorder %s13, 1
    %p52 = por %p50, %p51
    %p53 = scmp.ne.s32.totalorder %s44, %s45
    %p54 = scmp.eq.s32.totalorder %s13, 0
    %p55 = por %p53, %p54
    %p56 = scmp.ne.s32.totalorder %s44, %s45
    %p57 = scmp.eq.s32.totalorder %s14, 1
    %p58 = por %p56, %p57
    %p60 = scmp.ne.s32.totalorder %s45, %s59
    %p61 = scmp.eq.s32.totalorder %s14, 0
    %p62 = por %p60, %p61
    %s63 = ssub.s32 %s8, %s15
    %p64 = scmp.eq.s32.totalorder %s63, 0
    %s66 = sadd.s32 %s65, 1
    %s67 = scalar_select %p64, %s65, %s66
    %p70 = pneg %p64
    %p71 = scmp.eq.s32.totalorder %s8, 1
    %p72 = por %p70, %p71
    %p73 = scmp.ne.s32.totalorder %s65, %s68
    %p74 = scmp.eq.s32.totalorder %s8, 0
    %p75 = por %p73, %p74
    %p76 = scmp.ne.s32.totalorder %s65, %s68
    %p77 = scmp.eq.s32.totalorder %s13, 1
    %p78 = por %p76, %p77
    %p79 = scmp.ne.s32.totalorder %s68, %s69
    %p80 = scmp.eq.s32.totalorder %s13, 0
    %p81 = por %p79, %p80
    %p82 = scmp.ne.s32.totalorder %s68, %s69
    %p83 = scmp.eq.s32.totalorder %s14, 1
    %p84 = por %p82, %p83
    %p86 = scmp.ne.s32.totalorder %s69, %s85
    %p87 = scmp.eq.s32.totalorder %s14, 0
    %p88 = por %p86, %p87
    %p89 = scmp.le.s32.totalorder 1, %s8
    %p90 = scmp.lt.s32.totalorder %s8, 3
    %p91 = pnand %p89, %p90
    %p92 = pneg %p91
    // Predicated region
    $region9: #{up_conv_forward.2} parent=5 // pred_check
      _
    $region10: #{up_conv_forward.2} parent=5 // pred_check_branch
      %94 = sbr.rel (%p91) target = $region12
    $region11: #{up_conv_forward.2} parent=5 // pred_region
      %s95 = ssub.s32 %s8, 1
      // Predicated region
      $region13: #{up_conv_forward.2} parent=11 // pred_check
        %p96 = pneg %p55
      $region14: #{up_conv_forward.2} parent=11 // pred_check_branch
        %98 = sbr.rel (%p96) target = $region16
      $region15: #{up_conv_forward.2} parent=11 // pred_region
        _
      $region16: #{up_conv_forward.2} parent=11 // pred_fallthru
        _
    $region12: #{up_conv_forward.2} parent=5 // pred_fallthru
      _
    %p99 = scmp.lt.s32.totalorder %s8, 2
    // Predicated region
    $region17: #{up_conv_forward.2} parent=5 // pred_check
      %p100 = pneg %p99
    $region18: #{up_conv_forward.2} parent=5 // pred_check_branch
      %102 = sbr.rel (%p100) target = $region20
    $region19: #{up_conv_forward.2} parent=5 // pred_region
      // Predicated region
      $region21: #{up_conv_forward.2} parent=19 // pred_check
        %p103 = pneg %p28
      $region22: #{up_conv_forward.2} parent=19 // pred_check_branch
        %105 = sbr.rel (%p103) target = $region24
      $region23: #{up_conv_forward.2} parent=19 // pred_region
        %p106 = scmp.lt.s32.totalorder %s8, 1
        %s107 = scalar_select %p106, %s8, 1
        %s108 = smul.addr %s107, 4
        %s109 = scalar_lea.vmem %s0, %s108
      $region24: #{up_conv_forward.2} parent=19 // pred_fallthru
        _
    $region20: #{up_conv_forward.2} parent=5 // pred_fallthru
      _
    %p110 = scmp.le.s32.totalorder 1, %s8
    %p111 = scmp.lt.s32.totalorder %s8, 3
    %p112 = pnand %p110, %p111
    %p113 = pneg %p112
    // Predicated region
    $region25: #{up_conv_forward.2} parent=5 // pred_check
      _
    $region26: #{up_conv_forward.2} parent=5 // pred_check_branch
      %115 = sbr.rel (%p112) target = $region28
    $region27: #{up_conv_forward.2} parent=5 // pred_region
      %s116 = ssub.s32 %s8, 1
      %p117 = scmp.lt.s32.totalorder %s13, 1
      %s118 = scalar_select %p117, %s13, 1
      %s119 = smul.addr %s118, 4
      %s120 = scalar_lea.vmem %s0, %s119
      %p121 = pneg %p34
      %p122 = pneg %p31
      %p123 = pneg %p55
      %p124 = pneg %p52
      %p125 = pneg %p81
      %p126 = pneg %p78
      %p127 = scmp.lt.s32.totalorder %s13, 1
      %s128 = scalar_select %p127, %s13, 1
      %s129 = smul.addr %s128, 8
      %s130 = scalar_lea.vmem %s2, %s129
      %p131 = scmp.lt.s32.totalorder %s13, 1
      %s132 = scalar_select %p131, %s13, 1
      %s133 = smul.addr %s132, 4
      %s134 = scalar_lea.vmem %s0, %s133
      %p135 = scmp.lt.s32.totalorder %s13, 1
      %s136 = scalar_select %p135, %s13, 1
      %s137 = smul.addr %s136, 8
      %s138 = scalar_lea.vmem %s2, %s137
      %v139 = vld [vmem:[%s134] sm:$0xf]
      %141 = vrot.lane.b32.xlu0 %v139, 1
      %v142 = vpop.permute.xlu0 %141
      %vm144 = vcmask 7168
      %v145 = vsel %vm144, 0.0, %v142
      %vm146 = vcmask 138240
      %v147 = vsel %vm146, %v145, 0.0
      %v149 = vrot.slane %v147, 4
      %150 = vrot.lane.b32.xlu0 %v149, 127
      %v151 = vpop.permute.xlu0 %150
      %153 = vrot.lane.b32.xlu0 %v147, 126
      %v154 = vpop.permute.xlu0 %153
      %vm155 = vcmask 1043456
      %v156 = vsel %vm155, %v147, %v151
      %v157 = vld [vmem:[%s1] sm:$0xff]
      %vm158 = vcmask 97280
      %v160 = vsel %vm158, %v157, 0
      %v162 = vsel %vm155, %v154, 0
      %164 = vmatpush.msra.mxu0 0.0
      %165 = vmatpush.msra.mxu0 0.0
      %166 = vmatpush.msra.mxu0 0.0
      %167 = vmatpush.msra.mxu0 0.0
      %168 = vmatpush.msra.mxu0 0.0
      %169 = vmatpush.msra.mxu0 0.0
      %170 = vmatpush.msra.mxu0 0.0
      %171 = vmatpush.msra.mxu0 0.0
      %172 = vmatpush.msra.mxu0 0.0
      %173 = vmatpush.msra.mxu0 0.0
      %174 = vmatpush.msra.mxu0 0.0
      %175 = vmatpush.msra.mxu0 0.0
      %176 = vmatpush.msra.mxu0 0.0
      %177 = vmatpush.msra.mxu0 0.0
      %178 = vmatpush.msra.mxu0 %v162
      %179 = vmatpush.msra.mxu0 %v156
      %180 = vmatmul.f32.gmra.mxu0 %v160
      %v181 = vpop.f32.mrf.mxu0
      %v182 = vadd.f32 0.0, %v181
      %183 = vdwg.mxu0
      %vm184 = vcmask 130048
      %v185 = vsel %vm184, %v182, 0.0
      %186 = vadd.xlane.f32.xlu0 %v185
      %v187 = vpop.xlane.xlu0 %186
      %v188 = vmul.f32 %v187, 0.0625
      %v189 = vsub.f32 %v182, %v188
      %v190 = vmul.f32 %v189, %v189
      %v191 = vsel %vm184, %v190, 0.0
      %192 = vadd.xlane.f32.xlu0 %v191
      %v193 = vpop.xlane.xlu0 %192
      %v194 = vsel %vm144, %v187, %v193
      %vm195 = vcmask 15360
      %196 = vst.msk [vmem:[%s138] sm:$0xff] %vm195, %v194
      %p197 = scmp.lt.s32.totalorder %s13, 1
      %s198 = scalar_select %p197, %s13, 1
      %s199 = smul.addr %s198, 8
      %s200 = scalar_lea.vmem %s2, %s199
      // Predicated region
      $region29: #{up_conv_forward.2} parent=27 // pred_check
        %p201 = pneg %p78
      $region30: #{up_conv_forward.2} parent=27 // pred_check_branch
        %203 = sbr.rel (%p201) target = $region32
      $region31: #{up_conv_forward.2} parent=27 // pred_region
        _
      $region32: #{up_conv_forward.2} parent=27 // pred_fallthru
        _
    $region28: #{up_conv_forward.2} parent=5 // pred_fallthru
      _
    %p204 = scmp.le.s32.totalorder 2, %s8
    // Predicated region
    $region33: #{up_conv_forward.2} parent=5 // pred_check
      %p205 = pneg %p204
    $region34: #{up_conv_forward.2} parent=5 // pred_check_branch
      %207 = sbr.rel (%p205) target = $region36
    $region35: #{up_conv_forward.2} parent=5 // pred_region
      %s208 = ssub.s32 %s8, 2
      // Predicated region
      $region37: #{up_conv_forward.2} parent=35 // pred_check
        %p209 = pneg %p84
      $region38: #{up_conv_forward.2} parent=35 // pred_check_branch
        %211 = sbr.rel (%p209) target = $region40
      $region39: #{up_conv_forward.2} parent=35 // pred_region
        %p212 = scmp.lt.s32.totalorder %s14, 1
        %s213 = scalar_select %p212, %s14, 1
        %s214 = smul.addr %s213, 8
        %s215 = scalar_lea.vmem %s2, %s214
      $region40: #{up_conv_forward.2} parent=35 // pred_fallthru
        _
    $region36: #{up_conv_forward.2} parent=5 // pred_fallthru
      _
  $region6: #{up_conv_forward.2} parent=0 // loop_footer
    %s12 = sadd.s32 1, %s8
  $region7: #{up_conv_forward.2} parent=0 // loop_footer_branch
    %7 = sbr.rel target = $region3
  $region8: #{up_conv_forward.2} parent=0 // loop_exit
    _

// kernel: up_conv_forward.3
$region0: #{up_conv_forward.3}
  #allocation0 [shape = 'u32[]', space=smem, size = 0x4, offset = 0x4, fixed_abs, tag = 'smem constant byte address 0x4 - core index']
  #allocation1 [shape = 'u32[72,128]{1,0:T(1,128)}', space=vmem, size = 0x9000, scoped, tag = 'internal scratch']
  %s0 = inlined_call_operand.vmem [shape: f32[2,4,16], index: 0, kind: input, shape index: {}]
  %s1 = inlined_call_operand.vmem [shape: f32[8,12], index: 1, kind: input, shape index: {}]
  %s2 = inlined_call_operand.vmem [shape: f32[8,1], index: 2, kind: input, shape index: {}]
  %s3 = inlined_call_operand.vmem [shape: f32[8,1], index: 3, kind: input, shape index: {}]
  %s4 = inlined_call_operand.hbm [shape: f32[2,8,16], index: 4, kind: output, shape index: {}]
  %s5 = sld [smem:[#allocation0]]
  $region49: #{up_conv_forward.3} parent=0
    _
  %s7 = ssub.s32 1, %s5
  %s8 = scalar_select 0, %s7, %s5
  $region1: #{up_conv_forward.3} parent=0
    #allocation2 [shape = 'u8[8192]{0}', space=vmem, size = 0x2000, scoped, tag = 'output window, operand 0']
    #allocation3 [shape = 's32[2]{0}', space=sflag, size = 0x8, scoped, tag = 'scoped memory for up_conv_forward.3']
    %9 = vsyncpa [#allocation3], 0
    %s10 = scalar_lea.sflag [#allocation3], 1
    %11 = vsyncpa %s10, 0
    loop: start=0, step=1, limit=4
    $region2: #{up_conv_forward.3} parent=1 // loop_pre_header
      _
    $region3: #{up_conv_forward.3} parent=1 // loop_header
      %s13 = sphi 0, %s17
      %p14 = scmp.ge.s32.totalorder %s13, 4
      %s23 = sphi 0, %s25
      %s26 = sphi 0, %s23
      %s27 = sphi 0, %s26
      %s43 = sphi 0, %s27
      %s47 = sphi 0, %s47
      %s49 = sphi 0, %s47
      %s50 = sphi 0, %s49
      %s64 = sphi 0, %s50
      %s68 = sphi 0, %s68
      %s70 = sphi 0, %s68
      %s71 = sphi 0, %s70
      %s85 = sphi 0, %s71
      %s89 = sphi 0, %s89
      %s91 = sphi 0, %s89
      %s92 = sphi 0, %s91
      %s106 = sphi 0, %s92
      %s112 = sphi 0, %s114
      %s115 = sphi 0, %s112
      %s116 = sphi 0, %s115
      %s132 = sphi 0, %s116
    $region4: #{up_conv_forward.3} parent=1 // loop_header_branch
      %16 = sbr.rel (%p14) target = $region8
    $region5: #{up_conv_forward.3} parent=1 // loop_body
      %s18 = ssub.s32 %s13, 1
      %s19 = ssub.s32 %s13, 2
      %s20 = sadd.s32 %s13, 1
      %s21 = ssub.s32 %s13, %s20
      %p22 = scmp.eq.s32.totalorder %s21, 0
      %s24 = sadd.s32 %s23, 1
      %s25 = scalar_select %p22, %s23, %s24
      %p28 = pneg %p22
      %p29 = scmp.eq.s32.totalorder %s13, 1
      %p30 = por %p28, %p29
      %p31 = scmp.ne.s32.totalorder %s23, %s26
      %p32 = scmp.eq.s32.totalorder %s13, 0
      %p33 = por %p31, %p32
      %p34 = scmp.ne.s32.totalorder %s23, %s26
      %p35 = scmp.eq.s32.totalorder %s18, 1
      %p36 = por %p34, %p35
      %p37 = scmp.ne.s32.totalorder %s26, %s27
      %p38 = scmp.eq.s32.totalorder %s18, 0
      %p39 = por %p37, %p38
      %p40 = scmp.ne.s32.totalorder %s26, %s27
      %p41 = scmp.eq.s32.totalorder %s19, 1
      %p42 = por %p40, %p41
      %p44 = scmp.ne.s32.totalorder %s27, %s43
      %p45 = scmp.eq.s32.totalorder %s19, 0
      %p46 = por %p44, %p45
      %s48 = sadd.s32 %s47, 1
      %p51 = scmp.eq.s32.totalorder %s13, 1
      %p52 = scmp.ne.s32.totalorder %s47, %s49
      %p53 = scmp.eq.s32.totalorder %s13, 0
      %p54 = por %p52, %p53
      %p55 = scmp.ne.s32.totalorder %s47, %s49
      %p56 = scmp.eq.s32.totalorder %s18, 1
      %p57 = por %p55, %p56
      %p58 = scmp.ne.s32.totalorder %s49, %s50
      %p59 = scmp.eq.s32.totalorder %s18, 0
      %p60 = por %p58, %p59
      %p61 = scmp.ne.s32.totalorder %s49, %s50
      %p62 = scmp.eq.s32.totalorder %s19, 1
      %p63 = por %p61, %p62
      %p65 = scmp.ne.s32.totalorder %s50, %s64
      %p66 = scmp.eq.s32.totalorder %s19, 0
      %p67 = por %p65, %p66
      %s69 = sadd.s32 %s68, 1
      %p72 = scmp.eq.s32.totalorder %s13, 1
      %p73 = scmp.ne.s32.totalorder %s68, %s70
      %p74 = scmp.eq.s32.totalorder %s13, 0
      %p75 = por %p73, %p74
      %p76 = scmp.ne.s32.totalorder %s68, %s70
      %p77 = scmp.eq.s32.totalorder %s18, 1
      %p78 = por %p76, %p77
      %p79 = scmp.ne.s32.totalorder %s70, %s71
      %p80 = scmp.eq.s32.totalorder %s18, 0
      %p81 = por %p79, %p80
      %p82 = scmp.ne.s32.totalorder %s70, %s71
      %p83 = scmp.eq.s32.totalorder %s19, 1
      %p84 = por %p82, %p83
      %p86 = scmp.ne.s32.totalorder %s71, %s85
      %p87 = scmp.eq.s32.totalorder %s19, 0
      %p88 = por %p86, %p87
      %s90 = sadd.s32 %s89, 1
      %p93 = scmp.eq.s32.totalorder %s13, 1
      %p94 = scmp.ne.s32.totalorder %s89, %s91
      %p95 = scmp.eq.s32.totalorder %s13, 0
      %p96 = por %p94, %p95
      %p97 = scmp.ne.s32.totalorder %s89, %s91
      %p98 = scmp.eq.s32.totalorder %s18, 1
      %p99 = por %p97, %p98
      %p100 = scmp.ne.s32.totalorder %s91, %s92
      %p101 = scmp.eq.s32.totalorder %s18, 0
      %p102 = por %p100, %p101
      %p103 = scmp.ne.s32.totalorder %s91, %s92
      %p104 = scmp.eq.s32.totalorder %s19, 1
      %p105 = por %p103, %p104
      %p107 = scmp.ne.s32.totalorder %s92, %s106
      %p108 = scmp.eq.s32.totalorder %s19, 0
      %p109 = por %p107, %p108
      %s110 = ssub.s32 %s13, %s20
      %p111 = scmp.eq.s32.totalorder %s110, 0
      %s113 = sadd.s32 %s112, 1
      %s114 = scalar_select %p111, %s112, %s113
      %p117 = pneg %p111
      %p118 = scmp.eq.s32.totalorder %s13, 1
      %p119 = por %p117, %p118
      %p120 = scmp.ne.s32.totalorder %s112, %s115
      %p121 = scmp.eq.s32.totalorder %s13, 0
      %p122 = por %p120, %p121
      %p123 = scmp.ne.s32.totalorder %s112, %s115
      %p124 = scmp.eq.s32.totalorder %s18, 1
      %p125 = por %p123, %p124
      %p126 = scmp.ne.s32.totalorder %s115, %s116
      %p127 = scmp.eq.s32.totalorder %s18, 0
      %p128 = por %p126, %p127
      %p129 = scmp.ne.s32.totalorder %s115, %s116
      %p130 = scmp.eq.s32.totalorder %s19, 1
      %p131 = por %p129, %p130
      %p133 = scmp.ne.s32.totalorder %s116, %s132
      %p134 = scmp.eq.s32.totalorder %s19, 0
      %p135 = por %p133, %p134
      %p136 = scmp.le.s32.totalorder 1, %s13
      %p137 = scmp.lt.s32.totalorder %s13, 3
      %p138 = pnand %p136, %p137
      %p139 = pneg %p138
      // Predicated region
      $region9: #{up_conv_forward.3} parent=5 // pred_check
        _
      $region10: #{up_conv_forward.3} parent=5 // pred_check_branch
        %141 = sbr.rel (%p138) target = $region12
      $region11: #{up_conv_forward.3} parent=5 // pred_region
        %s142 = ssub.s32 %s13, 1
        // Predicated region
        $region13: #{up_conv_forward.3} parent=11 // pred_check
          %p143 = pneg %p60
        $region14: #{up_conv_forward.3} parent=11 // pred_check_branch
          %145 = sbr.rel (%p143) target = $region16
        $region15: #{up_conv_forward.3} parent=11 // pred_region
          _
        $region16: #{up_conv_forward.3} parent=11 // pred_fallthru
          _
        // Predicated region
        $region17: #{up_conv_forward.3} parent=11 // pred_check
          %p146 = pneg %p81
        $region18: #{up_conv_forward.3} parent=11 // pred_check_branch
          %148 = sbr.rel (%p146) target = $region20
        $region19: #{up_conv_forward.3} parent=11 // pred_region
          _
        $region20: #{up_conv_forward.3} parent=11 // pred_fallthru
          _
        // Predicated region
        $region21: #{up_conv_forward.3} parent=11 // pred_check
          %p149 = pneg %p102
        $region22: #{up_conv_forward.3} parent=11 // pred_check_branch
          %151 = sbr.rel (%p149) target = $region24
        $region23: #{up_conv_forward.3} parent=11 // pred_region
          _
        $region24: #{up_conv_forward.3} parent=11 // pred_fallthru
          _
      $region12: #{up_conv_forward.3} parent=5 // pred_fallthru
        _
      %p152 = scmp.lt.s32.totalorder %s13, 2
      // Predicated region
      $region25: #{up_conv_forward.3} parent=5 // pred_check
        %p153 = pneg %p152
      $region26: #{up_conv_forward.3} parent=5 // pred_check_branch
        %155 = sbr.rel (%p153) target = $region28
      $region27: #{up_conv_forward.3} parent=5 // pred_region
        // Predicated region
        $region29: #{up_conv_forward.3} parent=27 // pred_check
          %p156 = pneg %p33
        $region30: #{up_conv_forward.3} parent=27 // pred_check_branch
          %158 = sbr.rel (%p156) target = $region32
        $region31: #{up_conv_forward.3} parent=27 // pred_region
          %p159 = scmp.lt.s32.totalorder %s13, 1
          %s160 = scalar_select %p159, %s13, 1
          %s161 = smul.addr %s160, 4
          %s162 = scalar_lea.vmem %s0, %s161
        $region32: #{up_conv_forward.3} parent=27 // pred_fallthru
          _
      $region28: #{up_conv_forward.3} parent=5 // pred_fallthru
        _
      %p163 = scmp.le.s32.totalorder 1, %s13
      %p164 = scmp.lt.s32.totalorder %s13, 3
      %p165 = pnand %p163, %p164
      %p166 = pneg %p165
      // Predicated region
      $region33: #{up_conv_forward.3} parent=5 // pred_check
        _
      $region34: #{up_conv_forward.3} parent=5 // pred_check_branch
        %168 = sbr.rel (%p165) target = $region36
      $region35: #{up_conv_forward.3} parent=5 // pred_region
        %s169 = ssub.s32 %s13, 1
        %p170 = scmp.lt.s32.totalorder %s18, 1
        %s171 = scalar_select %p170, %s18, 1
        %s172 = smul.addr %s171, 4
        %s173 = scalar_lea.vmem %s0, %s172
        %p174 = pneg %p39
        %p175 = pneg %p36
        %p176 = pneg %p60
        %p177 = pneg %p57
        %p178 = pneg %p81
        %p179 = pneg %p78
        %p180 = pneg %p102
        %p181 = pneg %p99
        %p182 = pneg %p128
        %p183 = pneg %p125
        %s184 = sand.u32 %s115, 1
        %s185 = scalar_lea.sflag [#allocation3], %s184
        %s186 = sand.u32 %s115, 1
        %s187 = smul.addr %s186, 8
        %s188 = scalar_lea.vmem [#allocation2], %s187
        %p189 = scmp.lt.s32.totalorder %s18, 1
        %s190 = scalar_select %p189, %s18, 1
        %s191 = smul.addr %s190, 4
        %s192 = scalar_lea.vmem %s0, %s191
        %v193 = vld [vmem:[%s192] sm:$0xf]
        %195 = vrot.lane.b32.xlu0 %v193, 1
        %v196 = vpop.permute.xlu0 %195
        %vm198 = vcmask 7168
        %v199 = vsel %vm198, 0.0, %v196
        %vm200 = vcmask 138240
        %v201 = vsel %vm200, %v199, 0.0
        %v203 = vrot.slane %v201, 4
        %204 = vrot.lane.b32.xlu0 %v203, 127
        %v205 = vpop.permute.xlu0 %204
        %207 = vrot.lane.b32.xlu0 %v201, 126
        %v208 = vpop.permute.xlu0 %207
        %vm209 = vcmask 1043456
        %v210 = vsel %vm209, %v201, %v205
        %v211 = vld [vmem:[%s1] sm:$0xff]
        %vm212 = vcmask 97280
        %v214 = vsel %vm212, %v211, 0
        %v216 = vsel %vm209, %v208, 0
        %218 = vmatpush.msra.mxu0 0.0
        %219 = vmatpush.msra.mxu0 0.0
        %220 = vmatpush.msra.mxu0 0.0
        %221 = vmatpush.msra.mxu0 0.0
        %222 = vmatpush.msra.mxu0 0.0
        %223 = vmatpush.msra.mxu0 0.0
        %224 = vmatpush.msra.mxu0 0.0
        %225 = vmatpush.msra.mxu0 0.0
        %226 = vmatpush.msra.mxu0 0.0
        %227 = vmatpush.msra.mxu0 0.0
        %228 = vmatpush.msra.mxu0 0.0
        %229 = vmatpush.msra.mxu0 0.0
        %230 = vmatpush.msra.mxu0 0.0
        %231 = vmatpush.msra.mxu0 0.0
        %232 = vmatpush.msra.mxu0 %v216
        %233 = vmatpush.msra.mxu0 %v210
        %234 = vmatmul.f32.gmra.mxu0 %v214
        %v235 = vpop.f32.mrf.mxu0
        %v236 = vadd.f32 0.0, %v235
        %237 = vdwg.mxu0
        %v238 = vld [vmem:[%s2] sm:$0xff]
        %240 = vset.pattern.permute.xlu0 0
        %241 = vperm.xlu0 %240, %v238
        %v242 = vpop.permute.xlu0 %241
        %v244 = vmul.f32 %v236, %v242
        %v245 = vld [vmem:[%s3] sm:$0xff]
        %247 = vset.pattern.permute.xlu0 0
        %248 = vperm.xlu0 %247, %v245
        %v249 = vpop.permute.xlu0 %248
        %v251 = vadd.f32 %v244, %v249
        %v252 = vmax.f32 %v251, 0.0
        %vm253 = vcmask 130048
        %254 = vst.msk [vmem:[%s188] sm:$0xff] %vm253, %v252
        %s255 = sand.u32 %s115, 1
        %s256 = scalar_lea.sflag [#allocation3], %s255
        %s257 = sand.u32 %s115, 1
        %s258 = smul.addr %s257, 8
        %s259 = scalar_lea.vmem [#allocation2], %s258
        // Predicated region
        $region37: #{up_conv_forward.3} parent=35 // pred_check
          %p260 = pneg %p125
        $region38: #{up_conv_forward.3} parent=35 // pred_check_branch
          %262 = sbr.rel (%p260) target = $region40
        $region39: #{up_conv_forward.3} parent=35 // pred_region
          %264 = vsyncadd %s256, 0
          %s265 = smul.addr %s18, 8
          %s266 = scalar_lea.hbm %s4, %s265
          %s268 = sshll.u32 %s259, 4
          %s269 = int_to_ptr.vmem [resolvable:$true] %s268
          %s270 = sshll.u32 %s266, 4
          %s271 = int_to_ptr.hbm [resolvable:$true] %s270
          %273 = dma.vmem_to_hbm [thread:$0]  %s269, 128, %s271, %s256
        $region40: #{up_conv_forward.3} parent=35 // pred_fallthru
          _
      $region36: #{up_conv_forward.3} parent=5 // pred_fallthru
        _
      %p274 = scmp.le.s32.totalorder 2, %s13
      // Predicated region
      $region41: #{up_conv_forward.3} parent=5 // pred_check
        %p275 = pneg %p274
      $region42: #{up_conv_forward.3} parent=5 // pred_check_branch
        %277 = sbr.rel (%p275) target = $region44
      $region43: #{up_conv_forward.3} parent=5 // pred_region
        %s278 = ssub.s32 %s13, 2
        // Predicated region
        $region45: #{up_conv_forward.3} parent=43 // pred_check
          %p279 = pneg %p131
        $region46: #{up_conv_forward.3} parent=43 // pred_check_branch
          %281 = sbr.rel (%p279) target = $region48
        $region47: #{up_conv_forward.3} parent=43 // pred_region
          %s282 = sand.u32 %s116, 1
          %s283 = scalar_lea.sflag [#allocation3], %s282
          %s284 = sand.u32 %s116, 1
          %s285 = smul.addr %s284, 8
          %s286 = scalar_lea.vmem [#allocation2], %s285
          %288 = dma.done %s283, 128
        $region48: #{up_conv_forward.3} parent=43 // pred_fallthru
          _
      $region44: #{up_conv_forward.3} parent=5 // pred_fallthru
        _
    $region6: #{up_conv_forward.3} parent=1 // loop_footer
      %s17 = sadd.s32 1, %s13
    $region7: #{up_conv_forward.3} parent=1 // loop_footer_branch
      %12 = sbr.rel target = $region3
    $region8: #{up_conv_forward.3} parent=1 // loop_exit
      _
    %289 = vsyncpa [#allocation3], 1
    %s290 = scalar_lea.sflag [#allocation3], 1
    %291 = vsyncpa %s290, 1

</llo_original>
